<compile_context>
chip_gen: v5e
topology: v5e:2x2
jax: 0.10.0
libtpu: 0.0.40
codegen_flags: <defaults>
</compile_context>

<pallas_src>
import jax
import jax.numpy as jnp
from jax.experimental import pallas as pl
from jax.experimental.pallas import tpu as pltpu


def _round_up(v, m):
    return ((v + m - 1) // m) * m


def residual_block_kernel(x_ref, w1_ref, w2_ref, p_ref, o_ref):
    x = x_ref[...]                         # streaming tile, native dtype
    x_mm = x.astype(w1_ref.dtype)          # bf16 (or f32) MXU inputs

    p = p_ref[...].astype(jnp.float32)     # packed (4, D): b1, b2, gamma, beta
    b1, b2, gamma, beta = p[0:1], p[1:2], p[2:3], p[3:4]

    # --- MLP: Linear -> ReLU -> Linear (f32 accumulation) -----------------
    h = jnp.dot(x_mm, w1_ref[...], preferred_element_type=jnp.float32) + b1
    h = jnp.maximum(h, 0.0)
    y = jnp.dot(h.astype(w2_ref.dtype), w2_ref[...],
                preferred_element_type=jnp.float32) + b2

    # --- residual add (f32) ------------------------------------------------
    z = x.astype(jnp.float32) + y

    # --- LayerNorm over last dim (biased variance, eps=1e-5, f32) ----------
    d = z.shape[-1]
    mean = jnp.sum(z, axis=-1, keepdims=True) * (1.0 / d)
    zc = z - mean
    var = jnp.sum(zc * zc, axis=-1, keepdims=True) * (1.0 / d)
    inv = jax.lax.rsqrt(var + 1e-5)
    normed = zc * inv * gamma + beta

    # --- final ReLU ---------------------------------------------------------
    o_ref[...] = jnp.maximum(normed, 0.0).astype(o_ref.dtype)


def _make_specs(D, tm, single_buffer_resident):
    x_spec = pl.BlockSpec((tm, D), lambda i: (i, 0))
    o_spec = pl.BlockSpec((tm, D), lambda i: (i, 0))
    if single_buffer_resident:
        # Grid-invariant operands: single buffer (double-buffering buys nothing).
        w_spec = pl.BlockSpec((D, D), lambda i: (0, 0),
                              pipeline_mode=pl.Buffered(1))
        p_spec = pl.BlockSpec((4, D), lambda i: (0, 0),
                              pipeline_mode=pl.Buffered(1))
    else:
        w_spec = pl.BlockSpec((D, D), lambda i: (0, 0))
        p_spec = pl.BlockSpec((4, D), lambda i: (0, 0))
    return x_spec, w_spec, p_spec, o_spec


def residual_block(x, w1, b1, w2, b2, gamma, beta, *, tm=None,
                   use_bf16_matmul=True):
    """x: (B, D). w1/w2: PyTorch Linear weights (out, in) = (D, D).
    b1/b2/gamma/beta: (D,). tm: rows per grid step (None = auto)."""
    B, D = x.shape
    x_itemsize = jnp.dtype(x.dtype).itemsize

    # Pre-transpose Linear weights to (in, out); optionally cast to bf16 so
    # both matmuls take the native bf16 MXU path (f32 accumulation in-kernel).
    w_dtype = jnp.bfloat16 if use_bf16_matmul else w1.dtype
    w1_t = w1.T.astype(w_dtype)
    w2_t = w2.T.astype(w_dtype)
    w_itemsize = jnp.dtype(w_dtype).itemsize

    # Pack all (D,)-vectors into one resident (4, D) f32 input (they never hit
    # the MXU, so keep them f32 for the LayerNorm/bias math).
    params = jnp.stack([b1, b2, gamma, beta], axis=0).astype(jnp.float32)

    # Per-generation VMEM capacity (v5e/v6e: 128 MiB, v7x: 64 MiB per TC).
    try:
        vmem_cap = int(pltpu.get_tpu_info().vmem_capacity_bytes)
    except Exception:
        vmem_cap = 64 << 20
    vmem_budget = int(0.85 * vmem_cap)

    # --- batch tile selection ----------------------------------------------
    if tm is None:
        # Small D => HBM-bound: big row tiles amortize per-step overhead.
        tm = 1024 if D <= 256 else (512 if D <= 512 else 256)
    # Keep >= 2 grid steps so ("parallel",) can use both v7x TensorCores.
    if B > 8:
        tm = min(tm, _round_up(pl.cdiv(B, 2), 8))
    tm = max(8, _round_up(min(tm, _round_up(B, 8)), 8))
    # Cap tm so (double-buffered worst case) everything fits the VMEM budget.
    w_resident_worst = 2 * 2 * D * D * w_itemsize + 2 * 4 * max(D, 128) * 4
    per_row = 4 * D * x_itemsize + 6 * D * 4     # 2-buf in/out + f32 temporaries
    avail = vmem_budget - w_resident_worst - (2 << 20)
    if avail > 0:
        tm_cap = max(8, (avail // per_row) // 8 * 8)
        tm = min(tm, int(tm_cap))

    grid = (pl.cdiv(B, tm),)

    cost = pl.CostEstimate(
        flops=4 * B * D * D + 12 * B * D,
        transcendentals=B,
        bytes_accessed=2 * B * D * x_itemsize + 2 * D * D * w_itemsize + 4 * D * 4,
    )

    def _run(single_buffer_resident):
        x_spec, w_spec, p_spec, o_spec = _make_specs(D, tm, single_buffer_resident)
        n_wbuf = 1 if single_buffer_resident else 2
        need = (n_wbuf * 2 * D * D * w_itemsize            # resident weights
                + n_wbuf * 4 * max(D, 128) * 4             # packed params (padded)
                + 4 * tm * D * x_itemsize                  # 2-buf in + out tiles
                + 6 * tm * D * 4                           # f32 intermediates
                + (2 << 20))                               # headroom
        vmem_limit = int(min(max(need, 32 << 20), vmem_budget))
        out = pl.pallas_call(
            residual_block_kernel,
            out_shape=jax.ShapeDtypeStruct((B, D), x.dtype),
            grid_spec=pltpu.PrefetchScalarGridSpec(
                num_scalar_prefetch=0,
                grid=grid,
                in_specs=[x_spec, w_spec, w_spec, p_spec],
                out_specs=o_spec,
            ),
            compiler_params=pltpu.CompilerParams(
                dimension_semantics=("parallel",),
                vmem_limit_bytes=vmem_limit,
            ),
            cost_estimate=cost,
        )(x, w1_t, w2_t, params)
        return jax.block_until_ready(out)

    try:
        return _run(True)
    except Exception:
        # pipeline_mode=Buffered(1) unsupported on this JAX/Mosaic build.
        return _run(False)


def _reference(x, w1, b1, w2, b2, gamma, beta):
    # Pure-JAX reference matching PyTorch ResidualBlock.forward semantics.
    h = jnp.maximum(x @ w1.T + b1, 0.0)
    y = h @ w2.T + b2
    z = x + y
    mean = jnp.mean(z, axis=-1, keepdims=True)
    var = jnp.mean((z - mean) ** 2, axis=-1, keepdims=True)
    normed = (z - mean) / jnp.sqrt(var + 1e-5) * gamma + beta
    return jnp.maximum(normed, 0.0)


def _make_inputs(key, B, D, dtype=jnp.float32):
    kx, k1, k2, kb1, kb2 = jax.random.split(key, 5)
    bound = 1.0 / jnp.sqrt(D)
    x = jax.random.normal(kx, (B, D), dtype=dtype)
    w1 = jax.random.uniform(k1, (D, D), minval=-bound, maxval=bound, dtype=dtype)
    b1 = jax.random.uniform(kb1, (D,), minval=-bound, maxval=bound, dtype=dtype)
    w2 = jax.random.uniform(k2, (D, D), minval=-bound, maxval=bound, dtype=dtype)
    b2 = jax.random.uniform(kb2, (D,), minval=-bound, maxval=bound, dtype=dtype)
    gamma = jnp.ones((D,), dtype=dtype)   # LayerNorm weight init
    beta = jnp.zeros((D,), dtype=dtype)   # LayerNorm bias init
    return x, w1, b1, w2, b2, gamma, beta


if __name__ == "__main__":
    # Case 1: f32 MXU path, strict tolerance vs. reference (small batch, 1 tile).
    B, D = 8, 128
    args = _make_inputs(jax.random.PRNGKey(0), B, D)
    out = residual_block(*args, use_bf16_matmul=False)
    ref = _reference(*args)
    assert out.shape == (B, D)
    assert jnp.allclose(out, ref, atol=1e-5, rtol=1e-5), \
        "mismatch vs reference (f32 path)"

    # Case 2: default bf16-MXU path + uneven batch grid (B % tm != 0, no pad
    # copy; boundary block handled by Pallas). Looser tolerance for bf16 matmuls.
    B2, D2 = 40, 128
    args2 = _make_inputs(jax.random.PRNGKey(0), B2, D2)
    out2 = residual_block(*args2, tm=16)
    ref2 = _reference(*args2)
    assert out2.shape == (B2, D2)
    assert jnp.allclose(out2, ref2, atol=6e-2, rtol=6e-2), \
        "mismatch vs reference (bf16 path)"
    assert bool(jnp.all(jnp.isfinite(out2)))

    print("KERNEL_OK")
</pallas_src>

<mosaic_0001>
module attributes {stable_mosaic.version = 11 : i64} {
  func.func @residual_block_kernel(%arg0: i32, %arg1: memref<8x128xf32, #tpu.memory_space<vmem>>, %arg2: memref<128x128xf32, #tpu.memory_space<vmem>>, %arg3: memref<128x128xf32, #tpu.memory_space<vmem>>, %arg4: memref<4x128xf32, #tpu.memory_space<vmem>>, %arg5: memref<8x128xf32, #tpu.memory_space<vmem>>) attributes {dimension_semantics = [#tpu.dimension_semantics<parallel>], iteration_bounds = array<i64: 1>, scalar_prefetch = 0 : i64, scratch_operands = 0 : i64, tpu.core_type = #tpu.core_type<tc>, window_params = [{transform_indices = @transform_0, window_bounds = array<i64: 8, 128>}, {pipeline_mode = #tpu.pipeline_mode<synchronous>, transform_indices = @transform_1, window_bounds = array<i64: 128, 128>}, {pipeline_mode = #tpu.pipeline_mode<synchronous>, transform_indices = @transform_2, window_bounds = array<i64: 128, 128>}, {pipeline_mode = #tpu.pipeline_mode<synchronous>, transform_indices = @transform_3, window_bounds = array<i64: 4, 128>}, {transform_indices = @transform_4, window_bounds = array<i64: 8, 128>}]} {
    %c0 = arith.constant 0 : index
    %c0_0 = arith.constant 0 : index
    %0 = vector.load %arg1[%c0, %c0_0] : memref<8x128xf32, #tpu.memory_space<vmem>>, vector<8x128xf32>
    %c0_1 = arith.constant 0 : index
    %c0_2 = arith.constant 0 : index
    %1 = vector.load %arg4[%c0_1, %c0_2] : memref<4x128xf32, #tpu.memory_space<vmem>>, vector<4x128xf32>
    %2 = vector.extract_strided_slice %1 {offsets = [0, 0], sizes = [1, 128], strides = [1, 1]} : vector<4x128xf32> to vector<1x128xf32>
    %3 = vector.extract_strided_slice %1 {offsets = [1, 0], sizes = [1, 128], strides = [1, 1]} : vector<4x128xf32> to vector<1x128xf32>
    %4 = vector.extract_strided_slice %1 {offsets = [2, 0], sizes = [1, 128], strides = [1, 1]} : vector<4x128xf32> to vector<1x128xf32>
    %5 = vector.extract_strided_slice %1 {offsets = [3, 0], sizes = [1, 128], strides = [1, 1]} : vector<4x128xf32> to vector<1x128xf32>
    %c0_3 = arith.constant 0 : index
    %c0_4 = arith.constant 0 : index
    %6 = vector.load %arg2[%c0_3, %c0_4] : memref<128x128xf32, #tpu.memory_space<vmem>>, vector<128x128xf32>
    %cst = arith.constant dense<0.000000e+00> : vector<8x128xf32>
    %7 = tpu.matmul %0, %6, %cst {dimension_numbers = #tpu.dot_dimension_numbers<[1], [0], [0], [1], [0, 0, 1, 1], [], []>} : vector<8x128xf32>, vector<128x128xf32>, vector<8x128xf32> -> vector<8x128xf32>
    %8 = vector.broadcast %2 : vector<1x128xf32> to vector<8x128xf32>
    %9 = arith.addf %7, %8 : vector<8x128xf32>
    %cst_5 = arith.constant 0.000000e+00 : f32
    %10 = vector.broadcast %cst_5 : f32 to vector<8x128xf32>
    %11 = arith.maximumf %9, %10 : vector<8x128xf32>
    %c0_6 = arith.constant 0 : index
    %c0_7 = arith.constant 0 : index
    %12 = vector.load %arg3[%c0_6, %c0_7] : memref<128x128xf32, #tpu.memory_space<vmem>>, vector<128x128xf32>
    %cst_8 = arith.constant dense<0.000000e+00> : vector<8x128xf32>
    %13 = tpu.matmul %11, %12, %cst_8 {dimension_numbers = #tpu.dot_dimension_numbers<[1], [0], [0], [1], [0, 0, 1, 1], [], []>} : vector<8x128xf32>, vector<128x128xf32>, vector<8x128xf32> -> vector<8x128xf32>
    %14 = vector.broadcast %3 : vector<1x128xf32> to vector<8x128xf32>
    %15 = arith.addf %13, %14 : vector<8x128xf32>
    %16 = arith.addf %0, %15 : vector<8x128xf32>
    %cst_9 = arith.constant dense<0.000000e+00> : vector<8xf32>
    %17 = vector.multi_reduction <add>, %16, %cst_9 [1] : vector<8x128xf32> to vector<8xf32>
    %18 = vector.shape_cast %17 : vector<8xf32> to vector<8x1xf32>
    %cst_10 = arith.constant 7.812500e-03 : f32
    %19 = vector.broadcast %cst_10 : f32 to vector<8x1xf32>
    %20 = arith.mulf %18, %19 : vector<8x1xf32>
    %21 = vector.broadcast %20 : vector<8x1xf32> to vector<8x128xf32>
    %22 = arith.subf %16, %21 : vector<8x128xf32>
    %23 = arith.mulf %22, %22 : vector<8x128xf32>
    %cst_11 = arith.constant dense<0.000000e+00> : vector<8xf32>
    %24 = vector.multi_reduction <add>, %23, %cst_11 [1] : vector<8x128xf32> to vector<8xf32>
    %25 = vector.shape_cast %24 : vector<8xf32> to vector<8x1xf32>
    %cst_12 = arith.constant 7.812500e-03 : f32
    %26 = vector.broadcast %cst_12 : f32 to vector<8x1xf32>
    %27 = arith.mulf %25, %26 : vector<8x1xf32>
    %cst_13 = arith.constant 9.99999974E-6 : f32
    %28 = vector.broadcast %cst_13 : f32 to vector<8x1xf32>
    %29 = arith.addf %27, %28 : vector<8x1xf32>
    %30 = math.rsqrt %29 : vector<8x1xf32>
    %31 = vector.broadcast %30 : vector<8x1xf32> to vector<8x128xf32>
    %32 = arith.mulf %22, %31 : vector<8x128xf32>
    %33 = vector.broadcast %4 : vector<1x128xf32> to vector<8x128xf32>
    %34 = arith.mulf %32, %33 : vector<8x128xf32>
    %35 = vector.broadcast %5 : vector<1x128xf32> to vector<8x128xf32>
    %36 = arith.addf %34, %35 : vector<8x128xf32>
    %cst_14 = arith.constant 0.000000e+00 : f32
    %37 = vector.broadcast %cst_14 : f32 to vector<8x128xf32>
    %38 = arith.maximumf %36, %37 : vector<8x128xf32>
    %c0_15 = arith.constant 0 : index
    %c0_16 = arith.constant 0 : index
    %39 = vector.load %arg5[%c0_15, %c0_16] : memref<8x128xf32, #tpu.memory_space<vmem>>, vector<8x128xf32>
    tpu.vector_store %arg5[%c0_15, %c0_16], %38 {strides = array<i32>} : memref<8x128xf32, #tpu.memory_space<vmem>>, vector<8x128xf32>,
    return
  }
  func.func @transform_0(%arg0: i32) -> (i32, i32) {
    %c0_i32 = arith.constant 0 : i32
    %c0_i32_0 = arith.constant 0 : i32
    return %arg0, %c0_i32 : i32, i32
  }
  func.func @transform_1(%arg0: i32) -> (i32, i32) {
    %c0_i32 = arith.constant 0 : i32
    %c0_i32_0 = arith.constant 0 : i32
    %c0_i32_1 = arith.constant 0 : i32
    return %c0_i32, %c0_i32_0 : i32, i32
  }
  func.func @transform_2(%arg0: i32) -> (i32, i32) {
    %c0_i32 = arith.constant 0 : i32
    %c0_i32_0 = arith.constant 0 : i32
    %c0_i32_1 = arith.constant 0 : i32
    return %c0_i32, %c0_i32_0 : i32, i32
  }
  func.func @transform_3(%arg0: i32) -> (i32, i32) {
    %c0_i32 = arith.constant 0 : i32
    %c0_i32_0 = arith.constant 0 : i32
    %c0_i32_1 = arith.constant 0 : i32
    return %c0_i32, %c0_i32_0 : i32, i32
  }
  func.func @transform_4(%arg0: i32) -> (i32, i32) {
    %c0_i32 = arith.constant 0 : i32
    %c0_i32_0 = arith.constant 0 : i32
    return %arg0, %c0_i32 : i32, i32
  }
}

module attributes {stable_mosaic.version = 11 : i64} {
  func.func @residual_block_kernel(%arg0: i32, %arg1: memref<8x128xf32, #tpu.memory_space<vmem>>, %arg2: memref<128x128xf32, #tpu.memory_space<vmem>>, %arg3: memref<128x128xf32, #tpu.memory_space<vmem>>, %arg4: memref<4x128xf32, #tpu.memory_space<vmem>>, %arg5: memref<8x128xf32, #tpu.memory_space<vmem>>) attributes {dimension_semantics = [#tpu.dimension_semantics<parallel>], iteration_bounds = array<i64: 1>, scalar_prefetch = 0 : i64, scratch_operands = 0 : i64, tpu.core_type = #tpu.core_type<tc>, window_params = [{transform_indices = @transform_0, window_bounds = array<i64: 8, 128>}, {pipeline_mode = #tpu.pipeline_mode<synchronous>, transform_indices = @transform_1, window_bounds = array<i64: 128, 128>}, {pipeline_mode = #tpu.pipeline_mode<synchronous>, transform_indices = @transform_2, window_bounds = array<i64: 128, 128>}, {pipeline_mode = #tpu.pipeline_mode<synchronous>, transform_indices = @transform_3, window_bounds = array<i64: 4, 128>}, {transform_indices = @transform_4, window_bounds = array<i64: 8, 128>}]} {
    %c0 = arith.constant 0 : index
    %c0_0 = arith.constant 0 : index
    %0 = vector.load %arg1[%c0, %c0_0] : memref<8x128xf32, #tpu.memory_space<vmem>>, vector<8x128xf32>
    %c0_1 = arith.constant 0 : index
    %c0_2 = arith.constant 0 : index
    %1 = vector.load %arg4[%c0_1, %c0_2] : memref<4x128xf32, #tpu.memory_space<vmem>>, vector<4x128xf32>
    %2 = vector.extract_strided_slice %1 {offsets = [0, 0], sizes = [1, 128], strides = [1, 1]} : vector<4x128xf32> to vector<1x128xf32>
    %3 = vector.extract_strided_slice %1 {offsets = [1, 0], sizes = [1, 128], strides = [1, 1]} : vector<4x128xf32> to vector<1x128xf32>
    %4 = vector.extract_strided_slice %1 {offsets = [2, 0], sizes = [1, 128], strides = [1, 1]} : vector<4x128xf32> to vector<1x128xf32>
    %5 = vector.extract_strided_slice %1 {offsets = [3, 0], sizes = [1, 128], strides = [1, 1]} : vector<4x128xf32> to vector<1x128xf32>
    %c0_3 = arith.constant 0 : index
    %c0_4 = arith.constant 0 : index
    %6 = vector.load %arg2[%c0_3, %c0_4] : memref<128x128xf32, #tpu.memory_space<vmem>>, vector<128x128xf32>
    %cst = arith.constant dense<0.000000e+00> : vector<8x128xf32>
    %7 = tpu.matmul %0, %6, %cst {dimension_numbers = #tpu.dot_dimension_numbers<[1], [0], [0], [1], [0, 0, 1, 1], [], []>} : vector<8x128xf32>, vector<128x128xf32>, vector<8x128xf32> -> vector<8x128xf32>
    %8 = vector.broadcast %2 : vector<1x128xf32> to vector<8x128xf32>
    %9 = arith.addf %7, %8 : vector<8x128xf32>
    %cst_5 = arith.constant 0.000000e+00 : f32
    %10 = vector.broadcast %cst_5 : f32 to vector<8x128xf32>
    %11 = arith.maximumf %9, %10 : vector<8x128xf32>
    %c0_6 = arith.constant 0 : index
    %c0_7 = arith.constant 0 : index
    %12 = vector.load %arg3[%c0_6, %c0_7] : memref<128x128xf32, #tpu.memory_space<vmem>>, vector<128x128xf32>
    %cst_8 = arith.constant dense<0.000000e+00> : vector<8x128xf32>
    %13 = tpu.matmul %11, %12, %cst_8 {dimension_numbers = #tpu.dot_dimension_numbers<[1], [0], [0], [1], [0, 0, 1, 1], [], []>} : vector<8x128xf32>, vector<128x128xf32>, vector<8x128xf32> -> vector<8x128xf32>
    %14 = vector.broadcast %3 : vector<1x128xf32> to vector<8x128xf32>
    %15 = arith.addf %13, %14 : vector<8x128xf32>
    %16 = arith.addf %0, %15 : vector<8x128xf32>
    %cst_9 = arith.constant dense<0.000000e+00> : vector<8xf32>
    %17 = vector.multi_reduction <add>, %16, %cst_9 [1] : vector<8x128xf32> to vector<8xf32>
    %18 = vector.shape_cast %17 : vector<8xf32> to vector<8x1xf32>
    %cst_10 = arith.constant 7.812500e-03 : f32
    %19 = vector.broadcast %cst_10 : f32 to vector<8x1xf32>
    %20 = arith.mulf %18, %19 : vector<8x1xf32>
    %21 = vector.broadcast %20 : vector<8x1xf32> to vector<8x128xf32>
    %22 = arith.subf %16, %21 : vector<8x128xf32>
    %23 = arith.mulf %22, %22 : vector<8x128xf32>
    %cst_11 = arith.constant dense<0.000000e+00> : vector<8xf32>
    %24 = vector.multi_reduction <add>, %23, %cst_11 [1] : vector<8x128xf32> to vector<8xf32>
    %25 = vector.shape_cast %24 : vector<8xf32> to vector<8x1xf32>
    %cst_12 = arith.constant 7.812500e-03 : f32
    %26 = vector.broadcast %cst_12 : f32 to vector<8x1xf32>
    %27 = arith.mulf %25, %26 : vector<8x1xf32>
    %cst_13 = arith.constant 9.99999974E-6 : f32
    %28 = vector.broadcast %cst_13 : f32 to vector<8x1xf32>
    %29 = arith.addf %27, %28 : vector<8x1xf32>
    %30 = math.rsqrt %29 : vector<8x1xf32>
    %31 = vector.broadcast %30 : vector<8x1xf32> to vector<8x128xf32>
    %32 = arith.mulf %22, %31 : vector<8x128xf32>
    %33 = vector.broadcast %4 : vector<1x128xf32> to vector<8x128xf32>
    %34 = arith.mulf %32, %33 : vector<8x128xf32>
    %35 = vector.broadcast %5 : vector<1x128xf32> to vector<8x128xf32>
    %36 = arith.addf %34, %35 : vector<8x128xf32>
    %cst_14 = arith.constant 0.000000e+00 : f32
    %37 = vector.broadcast %cst_14 : f32 to vector<8x128xf32>
    %38 = arith.maximumf %36, %37 : vector<8x128xf32>
    %c0_15 = arith.constant 0 : index
    %c0_16 = arith.constant 0 : index
    %39 = vector.load %arg5[%c0_15, %c0_16] : memref<8x128xf32, #tpu.memory_space<vmem>>, vector<8x128xf32>
    tpu.vector_store %arg5[%c0_15, %c0_16], %38 {strides = array<i32>} : memref<8x128xf32, #tpu.memory_space<vmem>>, vector<8x128xf32>,
    return
  }
  func.func @transform_0(%arg0: i32) -> (i32, i32) {
    %c0_i32 = arith.constant 0 : i32
    %c0_i32_0 = arith.constant 0 : i32
    return %arg0, %c0_i32 : i32, i32
  }
  func.func @transform_1(%arg0: i32) -> (i32, i32) {
    %c0_i32 = arith.constant 0 : i32
    %c0_i32_0 = arith.constant 0 : i32
    %c0_i32_1 = arith.constant 0 : i32
    return %c0_i32, %c0_i32_0 : i32, i32
  }
  func.func @transform_2(%arg0: i32) -> (i32, i32) {
    %c0_i32 = arith.constant 0 : i32
    %c0_i32_0 = arith.constant 0 : i32
    %c0_i32_1 = arith.constant 0 : i32
    return %c0_i32, %c0_i32_0 : i32, i32
  }
  func.func @transform_3(%arg0: i32) -> (i32, i32) {
    %c0_i32 = arith.constant 0 : i32
    %c0_i32_0 = arith.constant 0 : i32
    %c0_i32_1 = arith.constant 0 : i32
    return %c0_i32, %c0_i32_0 : i32, i32
  }
  func.func @transform_4(%arg0: i32) -> (i32, i32) {
    %c0_i32 = arith.constant 0 : i32
    %c0_i32_0 = arith.constant 0 : i32
    return %arg0, %c0_i32 : i32, i32
  }
}

</mosaic_0001>

<llo_original>
// kernel: tpu_custom_call.1
$region0: #{tpu_custom_call.1}
  #allocation0 [shape = 'u32[]', space=smem, size = 0x4, offset = 0x4, fixed_abs, tag = 'smem constant byte address 0x4 - core index']
  #allocation1 [shape = 'u32[72,128]{1,0:T(1,128)}', space=vmem, size = 0x9000, scoped, tag = 'internal scratch']
  %s0 = inlined_call_operand.hbm [shape: f32[8,128], index: 0, kind: input, shape index: {}]
  %s1 = inlined_call_operand.hbm [shape: f32[128,128], index: 1, kind: input, shape index: {}]
  %s2 = inlined_call_operand.hbm [shape: f32[128,128], index: 2, kind: input, shape index: {}]
  %s3 = inlined_call_operand.hbm [shape: f32[4,128], index: 3, kind: input, shape index: {}]
  %s4 = inlined_call_operand.hbm [shape: f32[8,128], index: 4, kind: output, shape index: {}]
  %s5 = sld [smem:[#allocation0]]
  $region42: #{tpu_custom_call.1} parent=0
    _
  %s7 = ssub.s32 1, %s5
  %s8 = scalar_select 0, %s7, %s5
  $region1: #{tpu_custom_call.1} parent=0
    #allocation2 [shape = 'u8[4096]{0}', space=vmem, size = 0x1000, scoped, tag = 'input window, operand 0, single buffered']
    #allocation3 [shape = 's32[1]{0}', space=sflag, size = 0x4, scoped, tag = 'scoped memory for tpu_custom_call.1']
    #allocation4 [shape = 's32[1]{0}', space=sflag, size = 0x4, scoped, tag = 'scoped memory for tpu_custom_call.1']
    #allocation5 [shape = 'u8[65536]{0}', space=vmem, size = 0x10000, scoped, tag = 'input window, operand 1, single buffered']
    #allocation6 [shape = 's32[1]{0}', space=sflag, size = 0x4, scoped, tag = 'scoped memory for tpu_custom_call.1']
    #allocation7 [shape = 'u8[65536]{0}', space=vmem, size = 0x10000, scoped, tag = 'input window, operand 2, single buffered']
    #allocation8 [shape = 'u8[2048]{0}', space=vmem, size = 0x800, scoped, tag = 'input window, operand 3, single buffered']
    #allocation9 [shape = 's32[1]{0}', space=sflag, size = 0x4, scoped, tag = 'scoped memory for tpu_custom_call.1']
    #allocation10 [shape = 'u8[4096]{0}', space=vmem, size = 0x1000, scoped, tag = 'output window, operand 0, single buffered']
    %9 = vsyncpa [#allocation3], 0
    %10 = vsyncpa [#allocation6], 0
    %11 = vsyncpa [#allocation9], 0
    %12 = vsyncpa [#allocation4], 0
    // Predicated region
    $region2: #{tpu_custom_call.1} parent=1 // pred_check
      _
    $region3: #{tpu_custom_call.1} parent=1 // pred_check_branch
      %14 = sbr.rel (0) target = $region5
    $region4: #{tpu_custom_call.1} parent=1 // pred_region
      %16 = vsyncadd [#allocation3], 0
      %s18 = sshll.u32 %s0, 4
      %s19 = int_to_ptr.hbm [resolvable:$true] %s18
      %s20 = sshll.u32 [#allocation2], 4
      %s21 = int_to_ptr.vmem [resolvable:$true] %s20
      %23 = dma.hbm_to_vmem [thread:$0]  %s19, 128, %s21, [#allocation3]
    $region5: #{tpu_custom_call.1} parent=1 // pred_fallthru
      _
    // Predicated region
    $region6: #{tpu_custom_call.1} parent=1 // pred_check
      _
    $region7: #{tpu_custom_call.1} parent=1 // pred_check_branch
      %25 = sbr.rel (0) target = $region9
    $region8: #{tpu_custom_call.1} parent=1 // pred_region
      %27 = vsyncadd [#allocation6], 0
      %s28 = sshll.u32 %s1, 4
      %s29 = int_to_ptr.hbm [resolvable:$true] %s28
      %s30 = sshll.u32 [#allocation5], 4
      %s31 = int_to_ptr.vmem [resolvable:$true] %s30
      %36 = dma.hbm_to_vmem [thread:$0]  %s29, 2048, %s31, [#allocation6], 128, 128, 8
    $region9: #{tpu_custom_call.1} parent=1 // pred_fallthru
      _
    // Predicated region
    $region10: #{tpu_custom_call.1} parent=1 // pred_check
      _
    $region11: #{tpu_custom_call.1} parent=1 // pred_check_branch
      %38 = sbr.rel (0) target = $region13
    $region12: #{tpu_custom_call.1} parent=1 // pred_region
      %40 = vsyncadd [#allocation6], 0
      %s41 = sshll.u32 %s2, 4
      %s42 = int_to_ptr.hbm [resolvable:$true] %s41
      %s43 = sshll.u32 [#allocation7], 4
      %s44 = int_to_ptr.vmem [resolvable:$true] %s43
      %49 = dma.hbm_to_vmem [thread:$0]  %s42, 2048, %s44, [#allocation6], 128, 128, 8
    $region13: #{tpu_custom_call.1} parent=1 // pred_fallthru
      _
    // Predicated region
    $region14: #{tpu_custom_call.1} parent=1 // pred_check
      _
    $region15: #{tpu_custom_call.1} parent=1 // pred_check_branch
      %51 = sbr.rel (0) target = $region17
    $region16: #{tpu_custom_call.1} parent=1 // pred_region
      %53 = vsyncadd [#allocation9], 0
      %s55 = sshll.u32 %s3, 4
      %s56 = int_to_ptr.hbm [resolvable:$true] %s55
      %s57 = sshll.u32 [#allocation8], 4
      %s58 = int_to_ptr.vmem [resolvable:$true] %s57
      %60 = dma.hbm_to_vmem [thread:$0]  %s56, 64, %s58, [#allocation9]
    $region17: #{tpu_custom_call.1} parent=1 // pred_fallthru
      _
    // Predicated region
    $region18: #{tpu_custom_call.1} parent=1 // pred_check
      _
    $region19: #{tpu_custom_call.1} parent=1 // pred_check_branch
      %62 = sbr.rel (0) target = $region21
    $region20: #{tpu_custom_call.1} parent=1 // pred_region
      %64 = dma.done [#allocation3], 128
    $region21: #{tpu_custom_call.1} parent=1 // pred_fallthru
      _
    // Predicated region
    $region22: #{tpu_custom_call.1} parent=1 // pred_check
      _
    $region23: #{tpu_custom_call.1} parent=1 // pred_check_branch
      %66 = sbr.rel (0) target = $region25
    $region24: #{tpu_custom_call.1} parent=1 // pred_region
      %68 = dma.done [#allocation6], 2048
    $region25: #{tpu_custom_call.1} parent=1 // pred_fallthru
      _
    // Predicated region
    $region26: #{tpu_custom_call.1} parent=1 // pred_check
      _
    $region27: #{tpu_custom_call.1} parent=1 // pred_check_branch
      %70 = sbr.rel (0) target = $region29
    $region28: #{tpu_custom_call.1} parent=1 // pred_region
      %72 = dma.done [#allocation6], 2048
    $region29: #{tpu_custom_call.1} parent=1 // pred_fallthru
      _
    // Predicated region
    $region30: #{tpu_custom_call.1} parent=1 // pred_check
      _
    $region31: #{tpu_custom_call.1} parent=1 // pred_check_branch
      %74 = sbr.rel (0) target = $region33
    $region32: #{tpu_custom_call.1} parent=1 // pred_region
      %76 = dma.done [#allocation9], 64
    $region33: #{tpu_custom_call.1} parent=1 // pred_fallthru
      _
    %v77 = vld [vmem:[#allocation2] sm:$0xff]
    %v78 = vld [vmem:[#allocation8] sm:$0xf]
    %v79 = vld [vmem:[#allocation5] sm:$0xff]
    %v80 = vld [vmem:[#allocation5 + $0x8] sm:$0xff]
    %v81 = vld [vmem:[#allocation5 + $0x10] sm:$0xff]
    %v82 = vld [vmem:[#allocation5 + $0x18] sm:$0xff]
    %v83 = vld [vmem:[#allocation5 + $0x20] sm:$0xff]
    %v84 = vld [vmem:[#allocation5 + $0x28] sm:$0xff]
    %v85 = vld [vmem:[#allocation5 + $0x30] sm:$0xff]
    %v86 = vld [vmem:[#allocation5 + $0x38] sm:$0xff]
    %v87 = vld [vmem:[#allocation5 + $0x40] sm:$0xff]
    %v88 = vld [vmem:[#allocation5 + $0x48] sm:$0xff]
    %v89 = vld [vmem:[#allocation5 + $0x50] sm:$0xff]
    %v90 = vld [vmem:[#allocation5 + $0x58] sm:$0xff]
    %v91 = vld [vmem:[#allocation5 + $0x60] sm:$0xff]
    %v92 = vld [vmem:[#allocation5 + $0x68] sm:$0xff]
    %v93 = vld [vmem:[#allocation5 + $0x70] sm:$0xff]
    %v94 = vld [vmem:[#allocation5 + $0x78] sm:$0xff]
    %v95 = vperm.slane %v78, 0
    %96 = vmatpush.msra.mxu0 %v94
    %97 = vmatpush.msra.mxu0 %v93
    %98 = vmatpush.msra.mxu0 %v92
    %99 = vmatpush.msra.mxu0 %v91
    %100 = vmatpush.msra.mxu0 %v90
    %101 = vmatpush.msra.mxu0 %v89
    %102 = vmatpush.msra.mxu0 %v88
    %103 = vmatpush.msra.mxu0 %v87
    %104 = vmatpush.msra.mxu0 %v86
    %105 = vmatpush.msra.mxu0 %v85
    %106 = vmatpush.msra.mxu0 %v84
    %107 = vmatpush.msra.mxu0 %v83
    %108 = vmatpush.msra.mxu0 %v82
    %109 = vmatpush.msra.mxu0 %v81
    %110 = vmatpush.msra.mxu0 %v80
    %111 = vmatpush.msra.mxu0 %v79
    %112 = vmatmul.f32.gmra.mxu0 %v77
    %v113 = vpop.f32.mrf.mxu0
    %v114 = vadd.f32 %v95, %v113
    %115 = vdwg.mxu0
    %v116 = vmax.f32 %v114, 0.0
    %v117 = vld [vmem:[#allocation7] sm:$0xff]
    %v118 = vld [vmem:[#allocation7 + $0x8] sm:$0xff]
    %v119 = vld [vmem:[#allocation7 + $0x10] sm:$0xff]
    %v120 = vld [vmem:[#allocation7 + $0x18] sm:$0xff]
    %v121 = vld [vmem:[#allocation7 + $0x20] sm:$0xff]
    %v122 = vld [vmem:[#allocation7 + $0x28] sm:$0xff]
    %v123 = vld [vmem:[#allocation7 + $0x30] sm:$0xff]
    %v124 = vld [vmem:[#allocation7 + $0x38] sm:$0xff]
    %v125 = vld [vmem:[#allocation7 + $0x40] sm:$0xff]
    %v126 = vld [vmem:[#allocation7 + $0x48] sm:$0xff]
    %v127 = vld [vmem:[#allocation7 + $0x50] sm:$0xff]
    %v128 = vld [vmem:[#allocation7 + $0x58] sm:$0xff]
    %v129 = vld [vmem:[#allocation7 + $0x60] sm:$0xff]
    %v130 = vld [vmem:[#allocation7 + $0x68] sm:$0xff]
    %v131 = vld [vmem:[#allocation7 + $0x70] sm:$0xff]
    %v132 = vld [vmem:[#allocation7 + $0x78] sm:$0xff]
    %v133 = vperm.slane %v78, 1
    %134 = vmatpush.msra.mxu0 %v132
    %135 = vmatpush.msra.mxu0 %v131
    %136 = vmatpush.msra.mxu0 %v130
    %137 = vmatpush.msra.mxu0 %v129
    %138 = vmatpush.msra.mxu0 %v128
    %139 = vmatpush.msra.mxu0 %v127
    %140 = vmatpush.msra.mxu0 %v126
    %141 = vmatpush.msra.mxu0 %v125
    %142 = vmatpush.msra.mxu0 %v124
    %143 = vmatpush.msra.mxu0 %v123
    %144 = vmatpush.msra.mxu0 %v122
    %145 = vmatpush.msra.mxu0 %v121
    %146 = vmatpush.msra.mxu0 %v120
    %147 = vmatpush.msra.mxu0 %v119
    %148 = vmatpush.msra.mxu0 %v118
    %149 = vmatpush.msra.mxu0 %v117
    %150 = vmatmul.f32.gmra.mxu0 %v116
    %v151 = vpop.f32.mrf.mxu0
    %v152 = vadd.f32 %v133, %v151
    %153 = vdwg.mxu0
    %v154 = vadd.f32 %v77, %v152
    %155 = vadd.xlane.f32.xlu0 %v154
    %v156 = vpop.xlane.xlu0 %155
    %v157 = vmul.f32 %v156, 0.0078125
    %v158 = vsub.f32 %v154, %v157
    %v159 = vmul.f32 %v158, %v158
    %160 = vadd.xlane.f32.xlu0 %v159
    %v161 = vpop.xlane.xlu0 %160
    %v162 = vmul.f32 %v161, 0.0078125
    %v163 = vadd.f32 %v162, 1e-05
    %v164 = vrsqrt.pop %v163
    %v165 = vmul.f32 %v164, %v163
    %v166 = vmul.f32 %v165, %v164
    %v167 = vmul.f32 0.5, %v166
    %v168 = vsub.f32 1.5, %v167
    %v169 = vmul.f32 %v164, %v168
    %vm170 = vweird.f32 %v163
    %vm171 = vweird.f32 %v164
    %vm172 = vmor %vm170, %vm171
    %v173 = vsel %vm172, %v164, %v169
    %v174 = vmul.f32 %v158, %v173
    %v175 = vperm.slane %v78, 2
    %v176 = vmul.f32 %v174, %v175
    %v177 = vperm.slane %v78, 3
    %v178 = vadd.f32 %v176, %v177
    %v179 = vmax.f32 %v178, 0.0
    %180 = vst [vmem:[#allocation10] sm:$0xff] %v179
    // Predicated region
    $region34: #{tpu_custom_call.1} parent=1 // pred_check
      _
    $region35: #{tpu_custom_call.1} parent=1 // pred_check_branch
      %182 = sbr.rel (0) target = $region37
    $region36: #{tpu_custom_call.1} parent=1 // pred_region
      %184 = vsyncadd [#allocation4], 0
      %s186 = sshll.u32 [#allocation10], 4
      %s187 = int_to_ptr.vmem [resolvable:$true] %s186
      %s188 = sshll.u32 %s4, 4
      %s189 = int_to_ptr.hbm [resolvable:$true] %s188
      %191 = dma.vmem_to_hbm [thread:$0]  %s187, 128, %s189, [#allocation4]
    $region37: #{tpu_custom_call.1} parent=1 // pred_fallthru
      _
    // Predicated region
    $region38: #{tpu_custom_call.1} parent=1 // pred_check
      _
    $region39: #{tpu_custom_call.1} parent=1 // pred_check_branch
      %193 = sbr.rel (0) target = $region41
    $region40: #{tpu_custom_call.1} parent=1 // pred_region
      %195 = dma.done [#allocation4], 128
    $region41: #{tpu_custom_call.1} parent=1 // pred_fallthru
      _
    %196 = vsyncpa [#allocation3], 1
    %197 = vsyncpa [#allocation6], 1
    %198 = vsyncpa [#allocation9], 1
    %199 = vsyncpa [#allocation4], 1

// kernel: tpu_custom_call.1
$region0: #{tpu_custom_call.1}
  #allocation0 [shape = 'u32[]', space=smem, size = 0x4, offset = 0x4, fixed_abs, tag = 'smem constant byte address 0x4 - core index']
  #allocation1 [shape = 'u32[72,128]{1,0:T(1,128)}', space=vmem, size = 0x9000, scoped, tag = 'internal scratch']
  %s0 = inlined_call_operand.hbm [shape: f32[8,128], index: 0, kind: input, shape index: {}]
  %s1 = inlined_call_operand.hbm [shape: f32[128,128], index: 1, kind: input, shape index: {}]
  %s2 = inlined_call_operand.hbm [shape: f32[128,128], index: 2, kind: input, shape index: {}]
  %s3 = inlined_call_operand.hbm [shape: f32[4,128], index: 3, kind: input, shape index: {}]
  %s4 = inlined_call_operand.hbm [shape: f32[8,128], index: 4, kind: output, shape index: {}]
  %s5 = sld [smem:[#allocation0]]
  $region42: #{tpu_custom_call.1} parent=0
    _
  %s7 = ssub.s32 1, %s5
  %s8 = scalar_select 0, %s7, %s5
  $region1: #{tpu_custom_call.1} parent=0
    #allocation2 [shape = 'u8[4096]{0}', space=vmem, size = 0x1000, scoped, tag = 'input window, operand 0, single buffered']
    #allocation3 [shape = 's32[1]{0}', space=sflag, size = 0x4, scoped, tag = 'scoped memory for tpu_custom_call.1']
    #allocation4 [shape = 's32[1]{0}', space=sflag, size = 0x4, scoped, tag = 'scoped memory for tpu_custom_call.1']
    #allocation5 [shape = 'u8[65536]{0}', space=vmem, size = 0x10000, scoped, tag = 'input window, operand 1, single buffered']
    #allocation6 [shape = 's32[1]{0}', space=sflag, size = 0x4, scoped, tag = 'scoped memory for tpu_custom_call.1']
    #allocation7 [shape = 'u8[65536]{0}', space=vmem, size = 0x10000, scoped, tag = 'input window, operand 2, single buffered']
    #allocation8 [shape = 'u8[2048]{0}', space=vmem, size = 0x800, scoped, tag = 'input window, operand 3, single buffered']
    #allocation9 [shape = 's32[1]{0}', space=sflag, size = 0x4, scoped, tag = 'scoped memory for tpu_custom_call.1']
    #allocation10 [shape = 'u8[4096]{0}', space=vmem, size = 0x1000, scoped, tag = 'output window, operand 0, single buffered']
    %9 = vsyncpa [#allocation3], 0
    %10 = vsyncpa [#allocation6], 0
    %11 = vsyncpa [#allocation9], 0
    %12 = vsyncpa [#allocation4], 0
    // Predicated region
    $region2: #{tpu_custom_call.1} parent=1 // pred_check
      _
    $region3: #{tpu_custom_call.1} parent=1 // pred_check_branch
      %14 = sbr.rel (0) target = $region5
    $region4: #{tpu_custom_call.1} parent=1 // pred_region
      %16 = vsyncadd [#allocation3], 0
      %s18 = sshll.u32 %s0, 4
      %s19 = int_to_ptr.hbm [resolvable:$true] %s18
      %s20 = sshll.u32 [#allocation2], 4
      %s21 = int_to_ptr.vmem [resolvable:$true] %s20
      %23 = dma.hbm_to_vmem [thread:$0]  %s19, 128, %s21, [#allocation3]
    $region5: #{tpu_custom_call.1} parent=1 // pred_fallthru
      _
    // Predicated region
    $region6: #{tpu_custom_call.1} parent=1 // pred_check
      _
    $region7: #{tpu_custom_call.1} parent=1 // pred_check_branch
      %25 = sbr.rel (0) target = $region9
    $region8: #{tpu_custom_call.1} parent=1 // pred_region
      %27 = vsyncadd [#allocation6], 0
      %s28 = sshll.u32 %s1, 4
      %s29 = int_to_ptr.hbm [resolvable:$true] %s28
      %s30 = sshll.u32 [#allocation5], 4
      %s31 = int_to_ptr.vmem [resolvable:$true] %s30
      %36 = dma.hbm_to_vmem [thread:$0]  %s29, 2048, %s31, [#allocation6], 128, 128, 8
    $region9: #{tpu_custom_call.1} parent=1 // pred_fallthru
      _
    // Predicated region
    $region10: #{tpu_custom_call.1} parent=1 // pred_check
      _
    $region11: #{tpu_custom_call.1} parent=1 // pred_check_branch
      %38 = sbr.rel (0) target = $region13
    $region12: #{tpu_custom_call.1} parent=1 // pred_region
      %40 = vsyncadd [#allocation6], 0
      %s41 = sshll.u32 %s2, 4
      %s42 = int_to_ptr.hbm [resolvable:$true] %s41
      %s43 = sshll.u32 [#allocation7], 4
      %s44 = int_to_ptr.vmem [resolvable:$true] %s43
      %49 = dma.hbm_to_vmem [thread:$0]  %s42, 2048, %s44, [#allocation6], 128, 128, 8
    $region13: #{tpu_custom_call.1} parent=1 // pred_fallthru
      _
    // Predicated region
    $region14: #{tpu_custom_call.1} parent=1 // pred_check
      _
    $region15: #{tpu_custom_call.1} parent=1 // pred_check_branch
      %51 = sbr.rel (0) target = $region17
    $region16: #{tpu_custom_call.1} parent=1 // pred_region
      %53 = vsyncadd [#allocation9], 0
      %s55 = sshll.u32 %s3, 4
      %s56 = int_to_ptr.hbm [resolvable:$true] %s55
      %s57 = sshll.u32 [#allocation8], 4
      %s58 = int_to_ptr.vmem [resolvable:$true] %s57
      %60 = dma.hbm_to_vmem [thread:$0]  %s56, 64, %s58, [#allocation9]
    $region17: #{tpu_custom_call.1} parent=1 // pred_fallthru
      _
    // Predicated region
    $region18: #{tpu_custom_call.1} parent=1 // pred_check
      _
    $region19: #{tpu_custom_call.1} parent=1 // pred_check_branch
      %62 = sbr.rel (0) target = $region21
    $region20: #{tpu_custom_call.1} parent=1 // pred_region
      %64 = dma.done [#allocation3], 128
    $region21: #{tpu_custom_call.1} parent=1 // pred_fallthru
      _
    // Predicated region
    $region22: #{tpu_custom_call.1} parent=1 // pred_check
      _
    $region23: #{tpu_custom_call.1} parent=1 // pred_check_branch
      %66 = sbr.rel (0) target = $region25
    $region24: #{tpu_custom_call.1} parent=1 // pred_region
      %68 = dma.done [#allocation6], 2048
    $region25: #{tpu_custom_call.1} parent=1 // pred_fallthru
      _
    // Predicated region
    $region26: #{tpu_custom_call.1} parent=1 // pred_check
      _
    $region27: #{tpu_custom_call.1} parent=1 // pred_check_branch
      %70 = sbr.rel (0) target = $region29
    $region28: #{tpu_custom_call.1} parent=1 // pred_region
      %72 = dma.done [#allocation6], 2048
    $region29: #{tpu_custom_call.1} parent=1 // pred_fallthru
      _
    // Predicated region
    $region30: #{tpu_custom_call.1} parent=1 // pred_check
      _
    $region31: #{tpu_custom_call.1} parent=1 // pred_check_branch
      %74 = sbr.rel (0) target = $region33
    $region32: #{tpu_custom_call.1} parent=1 // pred_region
      %76 = dma.done [#allocation9], 64
    $region33: #{tpu_custom_call.1} parent=1 // pred_fallthru
      _
    %v77 = vld [vmem:[#allocation2] sm:$0xff]
    %v78 = vld [vmem:[#allocation8] sm:$0xf]
    %v79 = vld [vmem:[#allocation5] sm:$0xff]
    %v80 = vld [vmem:[#allocation5 + $0x8] sm:$0xff]
    %v81 = vld [vmem:[#allocation5 + $0x10] sm:$0xff]
    %v82 = vld [vmem:[#allocation5 + $0x18] sm:$0xff]
    %v83 = vld [vmem:[#allocation5 + $0x20] sm:$0xff]
    %v84 = vld [vmem:[#allocation5 + $0x28] sm:$0xff]
    %v85 = vld [vmem:[#allocation5 + $0x30] sm:$0xff]
    %v86 = vld [vmem:[#allocation5 + $0x38] sm:$0xff]
    %v87 = vld [vmem:[#allocation5 + $0x40] sm:$0xff]
    %v88 = vld [vmem:[#allocation5 + $0x48] sm:$0xff]
    %v89 = vld [vmem:[#allocation5 + $0x50] sm:$0xff]
    %v90 = vld [vmem:[#allocation5 + $0x58] sm:$0xff]
    %v91 = vld [vmem:[#allocation5 + $0x60] sm:$0xff]
    %v92 = vld [vmem:[#allocation5 + $0x68] sm:$0xff]
    %v93 = vld [vmem:[#allocation5 + $0x70] sm:$0xff]
    %v94 = vld [vmem:[#allocation5 + $0x78] sm:$0xff]
    %v95 = vperm.slane %v78, 0
    %96 = vmatpush.msra.mxu0 %v94
    %97 = vmatpush.msra.mxu0 %v93
    %98 = vmatpush.msra.mxu0 %v92
    %99 = vmatpush.msra.mxu0 %v91
    %100 = vmatpush.msra.mxu0 %v90
    %101 = vmatpush.msra.mxu0 %v89
    %102 = vmatpush.msra.mxu0 %v88
    %103 = vmatpush.msra.mxu0 %v87
    %104 = vmatpush.msra.mxu0 %v86
    %105 = vmatpush.msra.mxu0 %v85
    %106 = vmatpush.msra.mxu0 %v84
    %107 = vmatpush.msra.mxu0 %v83
    %108 = vmatpush.msra.mxu0 %v82
    %109 = vmatpush.msra.mxu0 %v81
    %110 = vmatpush.msra.mxu0 %v80
    %111 = vmatpush.msra.mxu0 %v79
    %112 = vmatmul.f32.gmra.mxu0 %v77
    %v113 = vpop.f32.mrf.mxu0
    %v114 = vadd.f32 %v95, %v113
    %115 = vdwg.mxu0
    %v116 = vmax.f32 %v114, 0.0
    %v117 = vld [vmem:[#allocation7] sm:$0xff]
    %v118 = vld [vmem:[#allocation7 + $0x8] sm:$0xff]
    %v119 = vld [vmem:[#allocation7 + $0x10] sm:$0xff]
    %v120 = vld [vmem:[#allocation7 + $0x18] sm:$0xff]
    %v121 = vld [vmem:[#allocation7 + $0x20] sm:$0xff]
    %v122 = vld [vmem:[#allocation7 + $0x28] sm:$0xff]
    %v123 = vld [vmem:[#allocation7 + $0x30] sm:$0xff]
    %v124 = vld [vmem:[#allocation7 + $0x38] sm:$0xff]
    %v125 = vld [vmem:[#allocation7 + $0x40] sm:$0xff]
    %v126 = vld [vmem:[#allocation7 + $0x48] sm:$0xff]
    %v127 = vld [vmem:[#allocation7 + $0x50] sm:$0xff]
    %v128 = vld [vmem:[#allocation7 + $0x58] sm:$0xff]
    %v129 = vld [vmem:[#allocation7 + $0x60] sm:$0xff]
    %v130 = vld [vmem:[#allocation7 + $0x68] sm:$0xff]
    %v131 = vld [vmem:[#allocation7 + $0x70] sm:$0xff]
    %v132 = vld [vmem:[#allocation7 + $0x78] sm:$0xff]
    %v133 = vperm.slane %v78, 1
    %134 = vmatpush.msra.mxu0 %v132
    %135 = vmatpush.msra.mxu0 %v131
    %136 = vmatpush.msra.mxu0 %v130
    %137 = vmatpush.msra.mxu0 %v129
    %138 = vmatpush.msra.mxu0 %v128
    %139 = vmatpush.msra.mxu0 %v127
    %140 = vmatpush.msra.mxu0 %v126
    %141 = vmatpush.msra.mxu0 %v125
    %142 = vmatpush.msra.mxu0 %v124
    %143 = vmatpush.msra.mxu0 %v123
    %144 = vmatpush.msra.mxu0 %v122
    %145 = vmatpush.msra.mxu0 %v121
    %146 = vmatpush.msra.mxu0 %v120
    %147 = vmatpush.msra.mxu0 %v119
    %148 = vmatpush.msra.mxu0 %v118
    %149 = vmatpush.msra.mxu0 %v117
    %150 = vmatmul.f32.gmra.mxu0 %v116
    %v151 = vpop.f32.mrf.mxu0
    %v152 = vadd.f32 %v133, %v151
    %153 = vdwg.mxu0
    %v154 = vadd.f32 %v77, %v152
    %155 = vadd.xlane.f32.xlu0 %v154
    %v156 = vpop.xlane.xlu0 %155
    %v157 = vmul.f32 %v156, 0.0078125
    %v158 = vsub.f32 %v154, %v157
    %v159 = vmul.f32 %v158, %v158
    %160 = vadd.xlane.f32.xlu0 %v159
    %v161 = vpop.xlane.xlu0 %160
    %v162 = vmul.f32 %v161, 0.0078125
    %v163 = vadd.f32 %v162, 1e-05
    %v164 = vrsqrt.pop %v163
    %v165 = vmul.f32 %v164, %v163
    %v166 = vmul.f32 %v165, %v164
    %v167 = vmul.f32 0.5, %v166
    %v168 = vsub.f32 1.5, %v167
    %v169 = vmul.f32 %v164, %v168
    %vm170 = vweird.f32 %v163
    %vm171 = vweird.f32 %v164
    %vm172 = vmor %vm170, %vm171
    %v173 = vsel %vm172, %v164, %v169
    %v174 = vmul.f32 %v158, %v173
    %v175 = vperm.slane %v78, 2
    %v176 = vmul.f32 %v174, %v175
    %v177 = vperm.slane %v78, 3
    %v178 = vadd.f32 %v176, %v177
    %v179 = vmax.f32 %v178, 0.0
    %180 = vst [vmem:[#allocation10] sm:$0xff] %v179
    // Predicated region
    $region34: #{tpu_custom_call.1} parent=1 // pred_check
      _
    $region35: #{tpu_custom_call.1} parent=1 // pred_check_branch
      %182 = sbr.rel (0) target = $region37
    $region36: #{tpu_custom_call.1} parent=1 // pred_region
      %184 = vsyncadd [#allocation4], 0
      %s186 = sshll.u32 [#allocation10], 4
      %s187 = int_to_ptr.vmem [resolvable:$true] %s186
      %s188 = sshll.u32 %s4, 4
      %s189 = int_to_ptr.hbm [resolvable:$true] %s188
      %191 = dma.vmem_to_hbm [thread:$0]  %s187, 128, %s189, [#allocation4]
    $region37: #{tpu_custom_call.1} parent=1 // pred_fallthru
      _
    // Predicated region
    $region38: #{tpu_custom_call.1} parent=1 // pred_check
      _
    $region39: #{tpu_custom_call.1} parent=1 // pred_check_branch
      %193 = sbr.rel (0) target = $region41
    $region40: #{tpu_custom_call.1} parent=1 // pred_region
      %195 = dma.done [#allocation4], 128
    $region41: #{tpu_custom_call.1} parent=1 // pred_fallthru
      _
    %196 = vsyncpa [#allocation3], 1
    %197 = vsyncpa [#allocation6], 1
    %198 = vsyncpa [#allocation9], 1
    %199 = vsyncpa [#allocation4], 1

</llo_original>
